<compile_context>
chip_gen: v7x
topology: tpu7x:2x2x1
jax: 0.10.0
libtpu: 0.0.40
codegen_flags: <defaults>
</compile_context>

<pallas_src>
import jax
import jax.numpy as jnp
from jax.experimental import pallas as pl
from jax.experimental.pallas import tpu as pltpu


def _mlp_kernel(xT_ref, w1_ref, b1_ref, w2_ref, b2_ref, w3_ref, b3_ref, oT_ref):
    # Transposed formulation: h^T = relu(W @ x^T + b);  all tiles lane-dense
    # on the batch axis.  MXU feeds in weight dtype, f32 accumulate, f32
    # bias/ReLU epilogue, f32 store.
    xT = xT_ref[...].astype(w1_ref.dtype)            # in-kernel cast (no extra HBM pass)
    h = jnp.dot(w1_ref[...], xT, preferred_element_type=jnp.float32)
    h = jnp.maximum(h + b1_ref[...], 0.0)
    h = jnp.dot(w2_ref[...], h.astype(w2_ref.dtype), preferred_element_type=jnp.float32)
    h = jnp.maximum(h + b2_ref[...], 0.0)
    h = jnp.dot(w3_ref[...], h.astype(w3_ref.dtype), preferred_element_type=jnp.float32)
    oT_ref[...] = (h + b3_ref[...]).astype(oT_ref.dtype)


def net_forward_t(xT, params, *, block_b=2048, compute_dtype=None):
    """Lane-dense fast path.

    xT:     [n_obs, B] float32  (batch on the lane axis)
    params: PyTorch-layout weights: w1[n_mid,n_obs], b1[n_mid,1],
            w2[n_mid,n_mid], b2[n_mid,1], w3[n_action,n_mid], b3[n_action,1]
    returns [n_action, B] float32
    """
    n_obs, B = xT.shape
    n_mid = params["w1"].shape[0]
    n_action = params["w3"].shape[0]

    w1, w2, w3 = params["w1"], params["w2"], params["w3"]
    b1 = params["b1"].astype(jnp.float32)
    b2 = params["b2"].astype(jnp.float32)
    b3 = params["b3"].astype(jnp.float32)
    if compute_dtype is not None:
        # Only the tiny weights are pre-cast; x is cast inside the kernel.
        w1 = w1.astype(compute_dtype)
        w2 = w2.astype(compute_dtype)
        w3 = w3.astype(compute_dtype)

    # Batch tile: multiple of 128 lanes.  Keep >= 2 tiles when possible so the
    # "parallel" axis shards across both TensorCores on v7x (neutral on
    # single-TC v5e/v6e).  No padding/slicing: Pallas masks the ragged tail.
    tb = min(block_b, -(-B // 2))
    tb = max(128, -(-tb // 128) * 128)
    n_tiles = pl.cdiv(B, tb)

    # Weights/biases: full-array blocks with constant index_map -> DMA'd once,
    # VMEM-resident across all batch tiles.
    pinned = lambda a: pl.BlockSpec(a.shape, lambda i: (0, 0))

    outT = pl.pallas_call(
        _mlp_kernel,
        out_shape=jax.ShapeDtypeStruct((n_action, B), jnp.float32),
        grid_spec=pltpu.PrefetchScalarGridSpec(
            num_scalar_prefetch=0,
            grid=(n_tiles,),
            in_specs=[
                pl.BlockSpec((n_obs, tb), lambda i: (0, i)),   # x^T tile (lane-dense)
                pinned(w1), pinned(b1),
                pinned(w2), pinned(b2),
                pinned(w3), pinned(b3),
            ],
            out_specs=pl.BlockSpec((n_action, tb), lambda i: (0, i)),
        ),
        compiler_params=pltpu.CompilerParams(
            dimension_semantics=("parallel",),   # shard batch tiles across TCs (v7x)
        ),
    )(xT, w1, b1, w2, b2, w3, b3)
    return outT


def _xla_forward(x, p):
    """Plain-XLA reference (and tiny-batch fallback), PyTorch semantics."""
    h = jnp.maximum(x @ p["w1"].T + p["b1"][:, 0], 0.0)
    h = jnp.maximum(h @ p["w2"].T + p["b2"][:, 0], 0.0)
    return h @ p["w3"].T + p["b3"][:, 0]


def net_forward(x, params, *, block_b=2048, compute_dtype=None):
    """PyTorch-layout wrapper: x [B, n_obs] -> [B, n_action].

    For maximum performance store x transposed upstream (e.g. in the replay
    buffer) and call net_forward_t directly; the transposes here are tiny
    (B*16 B / B*8 B) but avoidable.
    """
    B = x.shape[0]
    if B <= 32:
        # Acting path: pallas_call launch overhead dominates at ~20 KFLOPs.
        return _xla_forward(x, params)
    return net_forward_t(x.T, params, block_b=block_b,
                         compute_dtype=compute_dtype).T


def init_params(key, n_obs, n_mid, n_action):
    """Deterministic init mimicking nn.Linear defaults (uniform +/-1/sqrt(fan_in)).

    Weights kept in native PyTorch layout [out, in]; biases as [out, 1].
    """
    ks = jax.random.split(key, 6)

    def linear(kw, kb, fan_in, fan_out):
        bound = 1.0 / jnp.sqrt(jnp.float32(fan_in))
        w = jax.random.uniform(kw, (fan_out, fan_in), jnp.float32, -bound, bound)
        b = jax.random.uniform(kb, (fan_out, 1), jnp.float32, -bound, bound)
        return w, b

    w1, b1 = linear(ks[0], ks[1], n_obs, n_mid)
    w2, b2 = linear(ks[2], ks[3], n_mid, n_mid)
    w3, b3 = linear(ks[4], ks[5], n_mid, n_action)
    return dict(w1=w1, b1=b1, w2=w2, b2=b2, w3=w3, b3=b3)


if __name__ == "__main__":
    # DQN-like shapes: obs dim 4 (CartPole), hidden 32, 2 actions.
    n_obs, n_mid, n_action = 4, 32, 2

    key = jax.random.PRNGKey(0)
    kp, kx1, kx2 = jax.random.split(key, 3)
    params = init_params(kp, n_obs, n_mid, n_action)

    # --- Training-size batch -> Pallas kernel path ------------------------
    # B=515 with tb=384 -> 2 lane-dense tiles (dual-TC on v7x) and a ragged
    # last block handled by Pallas masking (no pad / slice in the wrapper).
    B = 515
    x = jax.random.normal(kx1, (B, n_obs), jnp.float32)
    out = jax.block_until_ready(net_forward(x, params))
    ref = _xla_forward(x, params)
    assert out.shape == (B, n_action)
    assert jnp.allclose(out, ref, atol=1e-5, rtol=1e-5)

    # Optional bf16 MXU path (weights pre-cast, x cast in-kernel, f32 epilogue)
    out_bf16 = jax.block_until_ready(
        net_forward(x, params, compute_dtype=jnp.bfloat16))
    assert jnp.allclose(out_bf16, ref, atol=2e-2, rtol=2e-2)

    # --- Tiny acting batch -> plain XLA fallback (same semantics) ----------
    x_small = jax.random.normal(kx2, (8, n_obs), jnp.float32)
    out_small = jax.block_until_ready(net_forward(x_small, params))
    assert out_small.shape == (8, n_action)
    assert jnp.allclose(out_small, _xla_forward(x_small, params),
                        atol=1e-5, rtol=1e-5)

    print("KERNEL_OK")
</pallas_src>

<mosaic_0001>
module attributes {stable_mosaic.version = 11 : i64} {
  func.func @_mlp_kernel(%arg0: i32, %arg1: memref<4x384xf32, #tpu.memory_space<vmem>>, %arg2: memref<32x4xf32, #tpu.memory_space<vmem>>, %arg3: memref<32x1xf32, #tpu.memory_space<vmem>>, %arg4: memref<32x32xf32, #tpu.memory_space<vmem>>, %arg5: memref<32x1xf32, #tpu.memory_space<vmem>>, %arg6: memref<2x32xf32, #tpu.memory_space<vmem>>, %arg7: memref<2x1xf32, #tpu.memory_space<vmem>>, %arg8: memref<2x384xf32, #tpu.memory_space<vmem>>) attributes {dimension_semantics = [#tpu.dimension_semantics<parallel>], iteration_bounds = array<i64: 2>, scalar_prefetch = 0 : i64, scratch_operands = 0 : i64, tpu.core_type = #tpu.core_type<tc>, window_params = [{transform_indices = @transform_0, window_bounds = array<i64: 4, 384>}, {pipeline_mode = #tpu.pipeline_mode<synchronous>, transform_indices = @transform_1, window_bounds = array<i64: 32, 4>}, {pipeline_mode = #tpu.pipeline_mode<synchronous>, transform_indices = @transform_2, window_bounds = array<i64: 32, 1>}, {pipeline_mode = #tpu.pipeline_mode<synchronous>, transform_indices = @transform_3, window_bounds = array<i64: 32, 32>}, {pipeline_mode = #tpu.pipeline_mode<synchronous>, transform_indices = @transform_4, window_bounds = array<i64: 32, 1>}, {pipeline_mode = #tpu.pipeline_mode<synchronous>, transform_indices = @transform_5, window_bounds = array<i64: 2, 32>}, {pipeline_mode = #tpu.pipeline_mode<synchronous>, transform_indices = @transform_6, window_bounds = array<i64: 2, 1>}, {transform_indices = @transform_7, window_bounds = array<i64: 2, 384>}]} {
    %c0 = arith.constant 0 : index
    %c0_0 = arith.constant 0 : index
    %0 = vector.load %arg1[%c0, %c0_0] : memref<4x384xf32, #tpu.memory_space<vmem>>, vector<4x384xf32>
    %c0_1 = arith.constant 0 : index
    %c0_2 = arith.constant 0 : index
    %1 = vector.load %arg2[%c0_1, %c0_2] : memref<32x4xf32, #tpu.memory_space<vmem>>, vector<32x4xf32>
    %cst = arith.constant dense<0.000000e+00> : vector<32x384xf32>
    %2 = tpu.matmul %1, %0, %cst {dimension_numbers = #tpu.dot_dimension_numbers<[1], [0], [0], [1], [0, 0, 1, 1], [], []>} : vector<32x4xf32>, vector<4x384xf32>, vector<32x384xf32> -> vector<32x384xf32>
    %c0_3 = arith.constant 0 : index
    %c0_4 = arith.constant 0 : index
    %3 = vector.load %arg3[%c0_3, %c0_4] : memref<32x1xf32, #tpu.memory_space<vmem>>, vector<32x1xf32>
    %4 = vector.broadcast %3 : vector<32x1xf32> to vector<32x384xf32>
    %5 = arith.addf %2, %4 : vector<32x384xf32>
    %cst_5 = arith.constant 0.000000e+00 : f32
    %6 = vector.broadcast %cst_5 : f32 to vector<32x384xf32>
    %7 = arith.maximumf %5, %6 : vector<32x384xf32>
    %c0_6 = arith.constant 0 : index
    %c0_7 = arith.constant 0 : index
    %8 = vector.load %arg4[%c0_6, %c0_7] : memref<32x32xf32, #tpu.memory_space<vmem>>, vector<32x32xf32>
    %cst_8 = arith.constant dense<0.000000e+00> : vector<32x384xf32>
    %9 = tpu.matmul %8, %7, %cst_8 {dimension_numbers = #tpu.dot_dimension_numbers<[1], [0], [0], [1], [0, 0, 1, 1], [], []>} : vector<32x32xf32>, vector<32x384xf32>, vector<32x384xf32> -> vector<32x384xf32>
    %c0_9 = arith.constant 0 : index
    %c0_10 = arith.constant 0 : index
    %10 = vector.load %arg5[%c0_9, %c0_10] : memref<32x1xf32, #tpu.memory_space<vmem>>, vector<32x1xf32>
    %11 = vector.broadcast %10 : vector<32x1xf32> to vector<32x384xf32>
    %12 = arith.addf %9, %11 : vector<32x384xf32>
    %cst_11 = arith.constant 0.000000e+00 : f32
    %13 = vector.broadcast %cst_11 : f32 to vector<32x384xf32>
    %14 = arith.maximumf %12, %13 : vector<32x384xf32>
    %c0_12 = arith.constant 0 : index
    %c0_13 = arith.constant 0 : index
    %15 = vector.load %arg6[%c0_12, %c0_13] : memref<2x32xf32, #tpu.memory_space<vmem>>, vector<2x32xf32>
    %cst_14 = arith.constant dense<0.000000e+00> : vector<2x384xf32>
    %16 = tpu.matmul %15, %14, %cst_14 {dimension_numbers = #tpu.dot_dimension_numbers<[1], [0], [0], [1], [0, 0, 1, 1], [], []>} : vector<2x32xf32>, vector<32x384xf32>, vector<2x384xf32> -> vector<2x384xf32>
    %c0_15 = arith.constant 0 : index
    %c0_16 = arith.constant 0 : index
    %17 = vector.load %arg7[%c0_15, %c0_16] : memref<2x1xf32, #tpu.memory_space<vmem>>, vector<2x1xf32>
    %18 = vector.broadcast %17 : vector<2x1xf32> to vector<2x384xf32>
    %19 = arith.addf %16, %18 : vector<2x384xf32>
    %c0_17 = arith.constant 0 : index
    %c0_18 = arith.constant 0 : index
    %20 = vector.load %arg8[%c0_17, %c0_18] : memref<2x384xf32, #tpu.memory_space<vmem>>, vector<2x384xf32>
    tpu.vector_store %arg8[%c0_17, %c0_18], %19 {strides = array<i32>} : memref<2x384xf32, #tpu.memory_space<vmem>>, vector<2x384xf32>,
    return
  }
  func.func @transform_0(%arg0: i32) -> (i32, i32) {
    %c0_i32 = arith.constant 0 : i32
    %c0_i32_0 = arith.constant 0 : i32
    return %c0_i32, %arg0 : i32, i32
  }
  func.func @transform_1(%arg0: i32) -> (i32, i32) {
    %c0_i32 = arith.constant 0 : i32
    %c0_i32_0 = arith.constant 0 : i32
    %c0_i32_1 = arith.constant 0 : i32
    return %c0_i32, %c0_i32_0 : i32, i32
  }
  func.func @transform_2(%arg0: i32) -> (i32, i32) {
    %c0_i32 = arith.constant 0 : i32
    %c0_i32_0 = arith.constant 0 : i32
    %c0_i32_1 = arith.constant 0 : i32
    return %c0_i32, %c0_i32_0 : i32, i32
  }
  func.func @transform_3(%arg0: i32) -> (i32, i32) {
    %c0_i32 = arith.constant 0 : i32
    %c0_i32_0 = arith.constant 0 : i32
    %c0_i32_1 = arith.constant 0 : i32
    return %c0_i32, %c0_i32_0 : i32, i32
  }
  func.func @transform_4(%arg0: i32) -> (i32, i32) {
    %c0_i32 = arith.constant 0 : i32
    %c0_i32_0 = arith.constant 0 : i32
    %c0_i32_1 = arith.constant 0 : i32
    return %c0_i32, %c0_i32_0 : i32, i32
  }
  func.func @transform_5(%arg0: i32) -> (i32, i32) {
    %c0_i32 = arith.constant 0 : i32
    %c0_i32_0 = arith.constant 0 : i32
    %c0_i32_1 = arith.constant 0 : i32
    return %c0_i32, %c0_i32_0 : i32, i32
  }
  func.func @transform_6(%arg0: i32) -> (i32, i32) {
    %c0_i32 = arith.constant 0 : i32
    %c0_i32_0 = arith.constant 0 : i32
    %c0_i32_1 = arith.constant 0 : i32
    return %c0_i32, %c0_i32_0 : i32, i32
  }
  func.func @transform_7(%arg0: i32) -> (i32, i32) {
    %c0_i32 = arith.constant 0 : i32
    %c0_i32_0 = arith.constant 0 : i32
    return %c0_i32, %arg0 : i32, i32
  }
}

</mosaic_0001>

<llo_original>
// kernel: tpu_custom_call.1
$region0: #{tpu_custom_call.1}
  #allocation0 [shape = 'u32[]', space=smem, size = 0x4, offset = 0x4, fixed_abs, tag = 'smem constant byte address 0x4 - core index']
  #allocation1 [shape = 'u32[144,128]{1,0:T(1,128)}', space=vmem, size = 0x12000, scoped, tag = 'internal scratch']
  %s0 = inlined_call_operand.vmem [shape: f32[4,515], index: 0, kind: input, shape index: {}]
  %s1 = inlined_call_operand.vmem [shape: f32[32,4], index: 1, kind: input, shape index: {}]
  %s2 = inlined_call_operand.vmem [shape: f32[32,1], index: 2, kind: input, shape index: {}]
  %s3 = inlined_call_operand.vmem [shape: f32[32,32], index: 3, kind: input, shape index: {}]
  %s4 = inlined_call_operand.vmem [shape: f32[32,1], index: 4, kind: input, shape index: {}]
  %s5 = inlined_call_operand.vmem [shape: f32[2,32], index: 5, kind: input, shape index: {}]
  %s6 = inlined_call_operand.vmem [shape: f32[2,1], index: 6, kind: input, shape index: {}]
  %s7 = inlined_call_operand.hbm [shape: f32[2,515], index: 7, kind: output, shape index: {}]
  %s8 = sld [smem:[#allocation0]]
  $region61: #{tpu_custom_call.1} parent=0
    _
  %s10 = ssub.s32 1, %s8
  %s11 = scalar_select 0, %s10, %s8
  $region1: #{tpu_custom_call.1} parent=0
    #allocation2 [shape = 'u8[6144]{0}', space=vmem, size = 0x1800, scoped, tag = 'output window, operand 0']
    #allocation3 [shape = 's32[2]{0}', space=sflag, size = 0x8, scoped, tag = 'scoped memory for tpu_custom_call.1']
    %12 = vsyncpa [#allocation3], 0
    %s13 = scalar_lea.sflag [#allocation3], 1
    %14 = vsyncpa %s13, 0
    loop: start=0, step=1, limit=4
    $region2: #{tpu_custom_call.1} parent=1 // loop_pre_header
      _
    $region3: #{tpu_custom_call.1} parent=1 // loop_header
      %s16 = sphi 0, %s20
      %p17 = scmp.ge.s32.totalorder %s16, 4
      %s26 = sphi 0, %s28
      %s29 = sphi 0, %s26
      %s30 = sphi 0, %s29
      %s46 = sphi 0, %s30
      %s50 = sphi 0, %s50
      %s52 = sphi 0, %s50
      %s53 = sphi 0, %s52
      %s67 = sphi 0, %s53
      %s71 = sphi 0, %s71
      %s73 = sphi 0, %s71
      %s74 = sphi 0, %s73
      %s88 = sphi 0, %s74
      %s92 = sphi 0, %s92
      %s94 = sphi 0, %s92
      %s95 = sphi 0, %s94
      %s109 = sphi 0, %s95
      %s113 = sphi 0, %s113
      %s115 = sphi 0, %s113
      %s116 = sphi 0, %s115
      %s130 = sphi 0, %s116
      %s134 = sphi 0, %s134
      %s136 = sphi 0, %s134
      %s137 = sphi 0, %s136
      %s151 = sphi 0, %s137
      %s155 = sphi 0, %s155
      %s157 = sphi 0, %s155
      %s158 = sphi 0, %s157
      %s172 = sphi 0, %s158
      %s178 = sphi 0, %s180
      %s181 = sphi 0, %s178
      %s182 = sphi 0, %s181
      %s198 = sphi 0, %s182
    $region4: #{tpu_custom_call.1} parent=1 // loop_header_branch
      %19 = sbr.rel (%p17) target = $region8
    $region5: #{tpu_custom_call.1} parent=1 // loop_body
      %s21 = ssub.s32 %s16, 1
      %s22 = ssub.s32 %s16, 2
      %s23 = sadd.s32 %s16, 1
      %s24 = ssub.s32 %s16, %s23
      %p25 = scmp.eq.s32.totalorder %s24, 0
      %s27 = sadd.s32 %s26, 1
      %s28 = scalar_select %p25, %s26, %s27
      %p31 = pneg %p25
      %p32 = scmp.eq.s32.totalorder %s16, 1
      %p33 = por %p31, %p32
      %p34 = scmp.ne.s32.totalorder %s26, %s29
      %p35 = scmp.eq.s32.totalorder %s16, 0
      %p36 = por %p34, %p35
      %p37 = scmp.ne.s32.totalorder %s26, %s29
      %p38 = scmp.eq.s32.totalorder %s21, 1
      %p39 = por %p37, %p38
      %p40 = scmp.ne.s32.totalorder %s29, %s30
      %p41 = scmp.eq.s32.totalorder %s21, 0
      %p42 = por %p40, %p41
      %p43 = scmp.ne.s32.totalorder %s29, %s30
      %p44 = scmp.eq.s32.totalorder %s22, 1
      %p45 = por %p43, %p44
      %p47 = scmp.ne.s32.totalorder %s30, %s46
      %p48 = scmp.eq.s32.totalorder %s22, 0
      %p49 = por %p47, %p48
      %s51 = sadd.s32 %s50, 1
      %p54 = scmp.eq.s32.totalorder %s16, 1
      %p55 = scmp.ne.s32.totalorder %s50, %s52
      %p56 = scmp.eq.s32.totalorder %s16, 0
      %p57 = por %p55, %p56
      %p58 = scmp.ne.s32.totalorder %s50, %s52
      %p59 = scmp.eq.s32.totalorder %s21, 1
      %p60 = por %p58, %p59
      %p61 = scmp.ne.s32.totalorder %s52, %s53
      %p62 = scmp.eq.s32.totalorder %s21, 0
      %p63 = por %p61, %p62
      %p64 = scmp.ne.s32.totalorder %s52, %s53
      %p65 = scmp.eq.s32.totalorder %s22, 1
      %p66 = por %p64, %p65
      %p68 = scmp.ne.s32.totalorder %s53, %s67
      %p69 = scmp.eq.s32.totalorder %s22, 0
      %p70 = por %p68, %p69
      %s72 = sadd.s32 %s71, 1
      %p75 = scmp.eq.s32.totalorder %s16, 1
      %p76 = scmp.ne.s32.totalorder %s71, %s73
      %p77 = scmp.eq.s32.totalorder %s16, 0
      %p78 = por %p76, %p77
      %p79 = scmp.ne.s32.totalorder %s71, %s73
      %p80 = scmp.eq.s32.totalorder %s21, 1
      %p81 = por %p79, %p80
      %p82 = scmp.ne.s32.totalorder %s73, %s74
      %p83 = scmp.eq.s32.totalorder %s21, 0
      %p84 = por %p82, %p83
      %p85 = scmp.ne.s32.totalorder %s73, %s74
      %p86 = scmp.eq.s32.totalorder %s22, 1
      %p87 = por %p85, %p86
      %p89 = scmp.ne.s32.totalorder %s74, %s88
      %p90 = scmp.eq.s32.totalorder %s22, 0
      %p91 = por %p89, %p90
      %s93 = sadd.s32 %s92, 1
      %p96 = scmp.eq.s32.totalorder %s16, 1
      %p97 = scmp.ne.s32.totalorder %s92, %s94
      %p98 = scmp.eq.s32.totalorder %s16, 0
      %p99 = por %p97, %p98
      %p100 = scmp.ne.s32.totalorder %s92, %s94
      %p101 = scmp.eq.s32.totalorder %s21, 1
      %p102 = por %p100, %p101
      %p103 = scmp.ne.s32.totalorder %s94, %s95
      %p104 = scmp.eq.s32.totalorder %s21, 0
      %p105 = por %p103, %p104
      %p106 = scmp.ne.s32.totalorder %s94, %s95
      %p107 = scmp.eq.s32.totalorder %s22, 1
      %p108 = por %p106, %p107
      %p110 = scmp.ne.s32.totalorder %s95, %s109
      %p111 = scmp.eq.s32.totalorder %s22, 0
      %p112 = por %p110, %p111
      %s114 = sadd.s32 %s113, 1
      %p117 = scmp.eq.s32.totalorder %s16, 1
      %p118 = scmp.ne.s32.totalorder %s113, %s115
      %p119 = scmp.eq.s32.totalorder %s16, 0
      %p120 = por %p118, %p119
      %p121 = scmp.ne.s32.totalorder %s113, %s115
      %p122 = scmp.eq.s32.totalorder %s21, 1
      %p123 = por %p121, %p122
      %p124 = scmp.ne.s32.totalorder %s115, %s116
      %p125 = scmp.eq.s32.totalorder %s21, 0
      %p126 = por %p124, %p125
      %p127 = scmp.ne.s32.totalorder %s115, %s116
      %p128 = scmp.eq.s32.totalorder %s22, 1
      %p129 = por %p127, %p128
      %p131 = scmp.ne.s32.totalorder %s116, %s130
      %p132 = scmp.eq.s32.totalorder %s22, 0
      %p133 = por %p131, %p132
      %s135 = sadd.s32 %s134, 1
      %p138 = scmp.eq.s32.totalorder %s16, 1
      %p139 = scmp.ne.s32.totalorder %s134, %s136
      %p140 = scmp.eq.s32.totalorder %s16, 0
      %p141 = por %p139, %p140
      %p142 = scmp.ne.s32.totalorder %s134, %s136
      %p143 = scmp.eq.s32.totalorder %s21, 1
      %p144 = por %p142, %p143
      %p145 = scmp.ne.s32.totalorder %s136, %s137
      %p146 = scmp.eq.s32.totalorder %s21, 0
      %p147 = por %p145, %p146
      %p148 = scmp.ne.s32.totalorder %s136, %s137
      %p149 = scmp.eq.s32.totalorder %s22, 1
      %p150 = por %p148, %p149
      %p152 = scmp.ne.s32.totalorder %s137, %s151
      %p153 = scmp.eq.s32.totalorder %s22, 0
      %p154 = por %p152, %p153
      %s156 = sadd.s32 %s155, 1
      %p159 = scmp.eq.s32.totalorder %s16, 1
      %p160 = scmp.ne.s32.totalorder %s155, %s157
      %p161 = scmp.eq.s32.totalorder %s16, 0
      %p162 = por %p160, %p161
      %p163 = scmp.ne.s32.totalorder %s155, %s157
      %p164 = scmp.eq.s32.totalorder %s21, 1
      %p165 = por %p163, %p164
      %p166 = scmp.ne.s32.totalorder %s157, %s158
      %p167 = scmp.eq.s32.totalorder %s21, 0
      %p168 = por %p166, %p167
      %p169 = scmp.ne.s32.totalorder %s157, %s158
      %p170 = scmp.eq.s32.totalorder %s22, 1
      %p171 = por %p169, %p170
      %p173 = scmp.ne.s32.totalorder %s158, %s172
      %p174 = scmp.eq.s32.totalorder %s22, 0
      %p175 = por %p173, %p174
      %s176 = ssub.s32 %s16, %s23
      %p177 = scmp.eq.s32.totalorder %s176, 0
      %s179 = sadd.s32 %s178, 1
      %s180 = scalar_select %p177, %s178, %s179
      %p183 = pneg %p177
      %p184 = scmp.eq.s32.totalorder %s16, 1
      %p185 = por %p183, %p184
      %p186 = scmp.ne.s32.totalorder %s178, %s181
      %p187 = scmp.eq.s32.totalorder %s16, 0
      %p188 = por %p186, %p187
      %p189 = scmp.ne.s32.totalorder %s178, %s181
      %p190 = scmp.eq.s32.totalorder %s21, 1
      %p191 = por %p189, %p190
      %p192 = scmp.ne.s32.totalorder %s181, %s182
      %p193 = scmp.eq.s32.totalorder %s21, 0
      %p194 = por %p192, %p193
      %p195 = scmp.ne.s32.totalorder %s181, %s182
      %p196 = scmp.eq.s32.totalorder %s22, 1
      %p197 = por %p195, %p196
      %p199 = scmp.ne.s32.totalorder %s182, %s198
      %p200 = scmp.eq.s32.totalorder %s22, 0
      %p201 = por %p199, %p200
      %p202 = scmp.le.s32.totalorder 1, %s16
      %p203 = scmp.lt.s32.totalorder %s16, 3
      %p204 = pnand %p202, %p203
      %p205 = pneg %p204
      // Predicated region
      $region9: #{tpu_custom_call.1} parent=5 // pred_check
        _
      $region10: #{tpu_custom_call.1} parent=5 // pred_check_branch
        %207 = sbr.rel (%p204) target = $region12
      $region11: #{tpu_custom_call.1} parent=5 // pred_region
        %s208 = ssub.s32 %s16, 1
        // Predicated region
        $region13: #{tpu_custom_call.1} parent=11 // pred_check
          %p209 = pneg %p63
        $region14: #{tpu_custom_call.1} parent=11 // pred_check_branch
          %211 = sbr.rel (%p209) target = $region16
        $region15: #{tpu_custom_call.1} parent=11 // pred_region
          _
        $region16: #{tpu_custom_call.1} parent=11 // pred_fallthru
          _
        // Predicated region
        $region17: #{tpu_custom_call.1} parent=11 // pred_check
          %p212 = pneg %p84
        $region18: #{tpu_custom_call.1} parent=11 // pred_check_branch
          %214 = sbr.rel (%p212) target = $region20
        $region19: #{tpu_custom_call.1} parent=11 // pred_region
          _
        $region20: #{tpu_custom_call.1} parent=11 // pred_fallthru
          _
        // Predicated region
        $region21: #{tpu_custom_call.1} parent=11 // pred_check
          %p215 = pneg %p105
        $region22: #{tpu_custom_call.1} parent=11 // pred_check_branch
          %217 = sbr.rel (%p215) target = $region24
        $region23: #{tpu_custom_call.1} parent=11 // pred_region
          _
        $region24: #{tpu_custom_call.1} parent=11 // pred_fallthru
          _
        // Predicated region
        $region25: #{tpu_custom_call.1} parent=11 // pred_check
          %p218 = pneg %p126
        $region26: #{tpu_custom_call.1} parent=11 // pred_check_branch
          %220 = sbr.rel (%p218) target = $region28
        $region27: #{tpu_custom_call.1} parent=11 // pred_region
          _
        $region28: #{tpu_custom_call.1} parent=11 // pred_fallthru
          _
        // Predicated region
        $region29: #{tpu_custom_call.1} parent=11 // pred_check
          %p221 = pneg %p147
        $region30: #{tpu_custom_call.1} parent=11 // pred_check_branch
          %223 = sbr.rel (%p221) target = $region32
        $region31: #{tpu_custom_call.1} parent=11 // pred_region
          _
        $region32: #{tpu_custom_call.1} parent=11 // pred_fallthru
          _
        // Predicated region
        $region33: #{tpu_custom_call.1} parent=11 // pred_check
          %p224 = pneg %p168
        $region34: #{tpu_custom_call.1} parent=11 // pred_check_branch
          %226 = sbr.rel (%p224) target = $region36
        $region35: #{tpu_custom_call.1} parent=11 // pred_region
          _
        $region36: #{tpu_custom_call.1} parent=11 // pred_fallthru
          _
      $region12: #{tpu_custom_call.1} parent=5 // pred_fallthru
        _
      %p227 = scmp.lt.s32.totalorder %s16, 2
      // Predicated region
      $region37: #{tpu_custom_call.1} parent=5 // pred_check
        %p228 = pneg %p227
      $region38: #{tpu_custom_call.1} parent=5 // pred_check_branch
        %230 = sbr.rel (%p228) target = $region40
      $region39: #{tpu_custom_call.1} parent=5 // pred_region
        // Predicated region
        $region41: #{tpu_custom_call.1} parent=39 // pred_check
          %p231 = pneg %p36
        $region42: #{tpu_custom_call.1} parent=39 // pred_check_branch
          %233 = sbr.rel (%p231) target = $region44
        $region43: #{tpu_custom_call.1} parent=39 // pred_region
          %s234 = smul.u32 3, %s16
          %s235 = ssub.s32 5, %s234
          %p236 = scmp.lt.s32.totalorder %s235, 3
          %s237 = scalar_select %p236, %s235, 3
          %s238 = smul.u32 64, %s237
          %p239 = scmp.lt.s32.totalorder %s234, 4
          %s240 = scalar_select %p239, %s234, 4
          %s241 = smul.addr %s240, 4
          %s242 = scalar_lea.vmem %s0, %s241
          %s243 = smul.u32 3, %s16
          %s244 = ssub.s32 5, %s243
          %p245 = scmp.lt.s32.totalorder %s244, 3
          %s246 = scalar_select %p245, %s244, 3
          %s247 = smul.u32 64, %s246
        $region44: #{tpu_custom_call.1} parent=39 // pred_fallthru
          _
      $region40: #{tpu_custom_call.1} parent=5 // pred_fallthru
        _
      %p248 = scmp.le.s32.totalorder 1, %s16
      %p249 = scmp.lt.s32.totalorder %s16, 3
      %p250 = pnand %p248, %p249
      %p251 = pneg %p250
      // Predicated region
      $region45: #{tpu_custom_call.1} parent=5 // pred_check
        _
      $region46: #{tpu_custom_call.1} parent=5 // pred_check_branch
        %253 = sbr.rel (%p250) target = $region48
      $region47: #{tpu_custom_call.1} parent=5 // pred_region
        %s254 = ssub.s32 %s16, 1
        %s255 = smul.u32 3, %s21
        %s256 = ssub.s32 5, %s255
        %p257 = scmp.lt.s32.totalorder %s256, 3
        %s258 = scalar_select %p257, %s256, 3
        %s259 = smul.u32 64, %s258
        %p260 = scmp.lt.s32.totalorder %s255, 4
        %s261 = scalar_select %p260, %s255, 4
        %s262 = smul.addr %s261, 4
        %s263 = scalar_lea.vmem %s0, %s262
        %p264 = pneg %p42
        %p265 = pneg %p39
        %p266 = pneg %p63
        %p267 = pneg %p60
        %p268 = pneg %p84
        %p269 = pneg %p81
        %p270 = pneg %p105
        %p271 = pneg %p102
        %p272 = pneg %p126
        %p273 = pneg %p123
        %p274 = pneg %p147
        %p275 = pneg %p144
        %p276 = pneg %p168
        %p277 = pneg %p165
        %p278 = pneg %p194
        %p279 = pneg %p191
        %s280 = sand.u32 %s181, 1
        %s281 = scalar_lea.sflag [#allocation3], %s280
        %s282 = sand.u32 %s181, 1
        %s283 = smul.addr %s282, 6
        %s284 = scalar_lea.vmem [#allocation2], %s283
        %s285 = smul.u32 3, %s21
        %s286 = ssub.s32 5, %s285
        %p287 = scmp.lt.s32.totalorder %s286, 3
        %s288 = scalar_select %p287, %s286, 3
        %s289 = smul.u32 64, %s288
        %p290 = scmp.lt.s32.totalorder %s285, 4
        %s291 = scalar_select %p290, %s285, 4
        %s292 = smul.addr %s291, 4
        %s293 = scalar_lea.vmem %s0, %s292
        %s294 = smul.u32 3, %s21
        %s295 = ssub.s32 5, %s294
        %p296 = scmp.lt.s32.totalorder %s295, 3
        %s297 = scalar_select %p296, %s295, 3
        %s298 = smul.u32 64, %s297
        %s299 = smul.u32 3, %s21
        %s300 = ssub.s32 5, %s299
        %p301 = scmp.lt.s32.totalorder %s300, 3
        %s302 = scalar_select %p301, %s300, 3
        %s303 = smul.u32 32, %s302
        %v304 = vld [vmem:[%s293] sm:$0xff]
        %v305 = vld [vmem:[%s293 + $0x8] sm:$0xf]
        %v306 = vld [vmem:[%s1] sm:$0xff]
        %v307 = vld [vmem:[%s1 + $0x8] sm:$0xff]
        %v308 = vld [vmem:[%s1 + $0x10] sm:$0xff]
        %v309 = vld [vmem:[%s1 + $0x18] sm:$0xff]
        %v310 = vld [vmem:[%s2] sm:$0xff]
        %v311 = vld [vmem:[%s2 + $0x8] sm:$0xff]
        %v312 = vld [vmem:[%s2 + $0x10] sm:$0xff]
        %v313 = vld [vmem:[%s2 + $0x18] sm:$0xff]
        %315 = vset.pattern.permute.xlu0 0
        %316 = vperm.xlu0 %315, %v310
        %v317 = vpop.permute.xlu0 %316
        %320 = vset.pattern.permute.xlu0 0
        %321 = vperm.xlu0 %320, %v311
        %v322 = vpop.permute.xlu0 %321
        %325 = vset.pattern.permute.xlu0 0
        %326 = vperm.xlu0 %325, %v312
        %v327 = vpop.permute.xlu0 %326
        %330 = vset.pattern.permute.xlu0 0
        %331 = vperm.xlu0 %330, %v313
        %v332 = vpop.permute.xlu0 %331
        %v336 = vcombine.high %v304, %v304
        %vm337 = vcmask 31744
        %v339 = vsel %vm337, %v306, 0
        %v342 = vsel %vm337, %v307, 0
        %v345 = vsel %vm337, %v308, 0
        %v348 = vsel %vm337, %v309, 0
        %vm350 = vcmask 1043456
        %v351 = vsel %vm350, %v304, 0
        %v353 = vsel %vm350, %v336, 0
        %v355 = vsel %vm350, %v305, 0
        %357 = vmatprep.subr.mxu0 %v353
        %358 = vmatpush1.msra.mxu0 %v351
        %359 = vmatprep.subr.mxu0 0.0
        %360 = vmatpush1.msra.mxu0 0.0
        %361 = vmatprep.subr.mxu0 0.0
        %362 = vmatpush1.msra.mxu0 0.0
        %363 = vmatprep.subr.mxu0 0.0
        %364 = vmatpush1.msra.mxu0 0.0
        %365 = vmatprep.subr.mxu0 0.0
        %366 = vmatpush1.msra.mxu0 0.0
        %367 = vmatprep.subr.mxu0 0.0
        %368 = vmatpush1.msra.mxu0 0.0
        %369 = vmatprep.subr.mxu0 0.0
        %370 = vmatpush1.msra.mxu0 0.0
        %371 = vmatprep.subr.mxu0 0.0
        %372 = vmatpush1.msra.mxu0 0.0
        %373 = vmatprep.subr.mxu0 0.0
        %374 = vmatpush1.msra.mxu0 0.0
        %375 = vmatprep.subr.mxu0 0.0
        %376 = vmatpush1.msra.mxu0 0.0
        %377 = vmatprep.subr.mxu0 0.0
        %378 = vmatpush1.msra.mxu0 0.0
        %379 = vmatprep.subr.mxu0 0.0
        %380 = vmatpush1.msra.mxu0 0.0
        %381 = vmatprep.subr.mxu0 0.0
        %382 = vmatpush1.msra.mxu0 0.0
        %383 = vmatprep.subr.mxu0 0.0
        %384 = vmatpush1.msra.mxu0 0.0
        %385 = vmatprep.subr.mxu0 0.0
        %386 = vmatpush1.msra.mxu0 0.0
        %387 = vmatprep.subr.mxu0 0.0
        %388 = vmatpush1.msra.mxu0 0.0
        %389 = vmatprep.subr.mxu0 0.0
        %390 = vmatpush1.msra.mxu0 0.0
        %391 = vmatprep.subr.mxu0 0.0
        %392 = vmatpush1.msra.mxu0 0.0
        %393 = vmatprep.subr.mxu0 0.0
        %394 = vmatpush1.msra.mxu0 0.0
        %395 = vmatprep.subr.mxu0 0.0
        %396 = vmatpush1.msra.mxu0 0.0
        %397 = vmatprep.subr.mxu0 0.0
        %398 = vmatpush1.msra.mxu0 0.0
        %399 = vmatprep.subr.mxu0 0.0
        %400 = vmatpush1.msra.mxu0 0.0
        %401 = vmatprep.subr.mxu0 0.0
        %402 = vmatpush1.msra.mxu0 0.0
        %403 = vmatprep.subr.mxu0 0.0
        %404 = vmatpush1.msra.mxu0 0.0
        %405 = vmatprep.subr.mxu0 0.0
        %406 = vmatpush1.msra.mxu0 0.0
        %407 = vmatprep.subr.mxu0 0.0
        %408 = vmatpush1.msra.mxu0 0.0
        %409 = vmatprep.subr.mxu0 0.0
        %410 = vmatpush1.msra.mxu0 0.0
        %411 = vmatprep.subr.mxu0 0.0
        %412 = vmatpush1.msra.mxu0 0.0
        %413 = vmatprep.subr.mxu0 0.0
        %414 = vmatpush1.msra.mxu0 0.0
        %415 = vmatprep.subr.mxu0 0.0
        %416 = vmatpush1.msra.mxu0 0.0
        %417 = vmatprep.subr.mxu0 0.0
        %418 = vmatpush1.msra.mxu0 0.0
        %419 = vmatprep.subr.mxu0 0.0
        %420 = vmatpush1.msra.mxu0 0.0
        %421 = vmatprep.mubr.f32.mxu0 0.0
        %422 = vmatmul.mubr.f32.gmra.mrb[0].mxu0 %v339
        %v423 = vpop.f32.mrb[0].mxu0
        %v424 = vadd.f32 %v317, %v423
        %v425 = vpop.f32.mrb[0].mxu0
        %v426 = vadd.f32 %v317, %v425
        %427 = vmatprep.mubr.f32.mxu0 0.0
        %428 = vmatmul.mubr.f32.gmra.mrb[0].mxu0 %v342
        %v429 = vpop.f32.mrb[0].mxu0
        %v430 = vadd.f32 %v322, %v429
        %v431 = vpop.f32.mrb[0].mxu0
        %v432 = vadd.f32 %v322, %v431
        %433 = vmatprep.mubr.f32.mxu0 0.0
        %434 = vmatmul.mubr.f32.gmra.mrb[0].mxu0 %v345
        %v435 = vpop.f32.mrb[0].mxu0
        %v436 = vadd.f32 %v327, %v435
        %v437 = vpop.f32.mrb[0].mxu0
        %v438 = vadd.f32 %v327, %v437
        %439 = vmatprep.mubr.f32.mxu0 0.0
        %440 = vmatmul.mubr.f32.gmra.mrb[0].mxu0 %v348
        %v441 = vpop.f32.mrb[0].mxu0
        %v442 = vadd.f32 %v332, %v441
        %v443 = vpop.f32.mrb[0].mxu0
        %v444 = vadd.f32 %v332, %v443
        %445 = vdwg.mxu0
        %446 = vmatprep.subr.mxu0 0.0
        %447 = vmatpush1.msra.mxu0 %v355
        %448 = vmatprep.subr.mxu0 0.0
        %449 = vmatpush1.msra.mxu0 0.0
        %450 = vmatprep.subr.mxu0 0.0
        %451 = vmatpush1.msra.mxu0 0.0
        %452 = vmatprep.subr.mxu0 0.0
        %453 = vmatpush1.msra.mxu0 0.0
        %454 = vmatprep.subr.mxu0 0.0
        %455 = vmatpush1.msra.mxu0 0.0
        %456 = vmatprep.subr.mxu0 0.0
        %457 = vmatpush1.msra.mxu0 0.0
        %458 = vmatprep.subr.mxu0 0.0
        %459 = vmatpush1.msra.mxu0 0.0
        %460 = vmatprep.subr.mxu0 0.0
        %461 = vmatpush1.msra.mxu0 0.0
        %462 = vmatprep.subr.mxu0 0.0
        %463 = vmatpush1.msra.mxu0 0.0
        %464 = vmatprep.subr.mxu0 0.0
        %465 = vmatpush1.msra.mxu0 0.0
        %466 = vmatprep.subr.mxu0 0.0
        %467 = vmatpush1.msra.mxu0 0.0
        %468 = vmatprep.subr.mxu0 0.0
        %469 = vmatpush1.msra.mxu0 0.0
        %470 = vmatprep.subr.mxu0 0.0
        %471 = vmatpush1.msra.mxu0 0.0
        %472 = vmatprep.subr.mxu0 0.0
        %473 = vmatpush1.msra.mxu0 0.0
        %474 = vmatprep.subr.mxu0 0.0
        %475 = vmatpush1.msra.mxu0 0.0
        %476 = vmatprep.subr.mxu0 0.0
        %477 = vmatpush1.msra.mxu0 0.0
        %478 = vmatprep.subr.mxu0 0.0
        %479 = vmatpush1.msra.mxu0 0.0
        %480 = vmatprep.subr.mxu0 0.0
        %481 = vmatpush1.msra.mxu0 0.0
        %482 = vmatprep.subr.mxu0 0.0
        %483 = vmatpush1.msra.mxu0 0.0
        %484 = vmatprep.subr.mxu0 0.0
        %485 = vmatpush1.msra.mxu0 0.0
        %486 = vmatprep.subr.mxu0 0.0
        %487 = vmatpush1.msra.mxu0 0.0
        %488 = vmatprep.subr.mxu0 0.0
        %489 = vmatpush1.msra.mxu0 0.0
        %490 = vmatprep.subr.mxu0 0.0
        %491 = vmatpush1.msra.mxu0 0.0
        %492 = vmatprep.subr.mxu0 0.0
        %493 = vmatpush1.msra.mxu0 0.0
        %494 = vmatprep.subr.mxu0 0.0
        %495 = vmatpush1.msra.mxu0 0.0
        %496 = vmatprep.subr.mxu0 0.0
        %497 = vmatpush1.msra.mxu0 0.0
        %498 = vmatprep.subr.mxu0 0.0
        %499 = vmatpush1.msra.mxu0 0.0
        %500 = vmatprep.subr.mxu0 0.0
        %501 = vmatpush1.msra.mxu0 0.0
        %502 = vmatprep.subr.mxu0 0.0
        %503 = vmatpush1.msra.mxu0 0.0
        %504 = vmatprep.subr.mxu0 0.0
        %505 = vmatpush1.msra.mxu0 0.0
        %506 = vmatprep.subr.mxu0 0.0
        %507 = vmatpush1.msra.mxu0 0.0
        %508 = vmatprep.subr.mxu0 0.0
        %509 = vmatpush1.msra.mxu0 0.0
        %510 = vmatprep.mubr.f32.mxu0 0.0
        %511 = vmatmul.mubr.f32.gmra.mrb[0].mxu0 %v339
        %v512 = vpop.f32.mrb[0].mxu0
        %v513 = vadd.f32 %v317, %v512
        %v514 = vpop.f32.mrb[0].mxu0
        %515 = vmatprep.mubr.f32.mxu0 0.0
        %516 = vmatmul.mubr.f32.gmra.mrb[0].mxu0 %v342
        %v517 = vpop.f32.mrb[0].mxu0
        %v518 = vadd.f32 %v322, %v517
        %v519 = vpop.f32.mrb[0].mxu0
        %520 = vmatprep.mubr.f32.mxu0 0.0
        %521 = vmatmul.mubr.f32.gmra.mrb[0].mxu0 %v345
        %v522 = vpop.f32.mrb[0].mxu0
        %v523 = vadd.f32 %v327, %v522
        %v524 = vpop.f32.mrb[0].mxu0
        %525 = vmatprep.mubr.f32.mxu0 0.0
        %526 = vmatmul.mubr.f32.gmra.mrb[0].mxu0 %v348
        %v527 = vpop.f32.mrb[0].mxu0
        %v528 = vadd.f32 %v332, %v527
        %v529 = vpop.f32.mrb[0].mxu0
        %530 = vdwg.mxu0
        %v531 = vmax.f32 %v424, 0.0
        %v532 = vmax.f32 %v426, 0.0
        %v533 = vmax.f32 %v513, 0.0
        %v534 = vmax.f32 %v430, 0.0
        %v535 = vmax.f32 %v432, 0.0
        %v536 = vmax.f32 %v518, 0.0
        %v537 = vmax.f32 %v436, 0.0
        %v538 = vmax.f32 %v438, 0.0
        %v539 = vmax.f32 %v523, 0.0
        %v540 = vmax.f32 %v442, 0.0
        %v541 = vmax.f32 %v444, 0.0
        %v542 = vmax.f32 %v528, 0.0
        %v543 = vld [vmem:[%s3] sm:$0xff]
        %v544 = vld [vmem:[%s3 + $0x8] sm:$0xff]
        %v545 = vld [vmem:[%s3 + $0x10] sm:$0xff]
        %v546 = vld [vmem:[%s3 + $0x18] sm:$0xff]
        %v547 = vld [vmem:[%s4] sm:$0xff]
        %v548 = vld [vmem:[%s4 + $0x8] sm:$0xff]
        %v549 = vld [vmem:[%s4 + $0x10] sm:$0xff]
        %v550 = vld [vmem:[%s4 + $0x18] sm:$0xff]
        %552 = vset.pattern.permute.xlu0 0
        %553 = vperm.xlu0 %552, %v547
        %v554 = vpop.permute.xlu0 %553
        %557 = vset.pattern.permute.xlu0 0
        %558 = vperm.xlu0 %557, %v548
        %v559 = vpop.permute.xlu0 %558
        %562 = vset.pattern.permute.xlu0 0
        %563 = vperm.xlu0 %562, %v549
        %v564 = vpop.permute.xlu0 %563
        %567 = vset.pattern.permute.xlu0 0
        %568 = vperm.xlu0 %567, %v550
        %v569 = vpop.permute.xlu0 %568
        %vm571 = vcmask 261120
        %v573 = vsel %vm571, %v543, 0
        %v576 = vsel %vm571, %v544, 0
        %v579 = vsel %vm571, %v545, 0
        %v582 = vsel %vm571, %v546, 0
        %584 = vmatprep.subr.mxu0 %v532
        %585 = vmatpush1.msra.mxu0 %v531
        %586 = vmatprep.subr.mxu0 %v535
        %587 = vmatpush1.msra.mxu0 %v534
        %588 = vmatprep.subr.mxu0 %v538
        %589 = vmatpush1.msra.mxu0 %v537
        %590 = vmatprep.subr.mxu0 %v541
        %591 = vmatpush1.msra.mxu0 %v540
        %592 = vmatprep.subr.mxu0 0.0
        %593 = vmatpush1.msra.mxu0 0.0
        %594 = vmatprep.subr.mxu0 0.0
        %595 = vmatpush1.msra.mxu0 0.0
        %596 = vmatprep.subr.mxu0 0.0
        %597 = vmatpush1.msra.mxu0 0.0
        %598 = vmatprep.subr.mxu0 0.0
        %599 = vmatpush1.msra.mxu0 0.0
        %600 = vmatprep.subr.mxu0 0.0
        %601 = vmatpush1.msra.mxu0 0.0
        %602 = vmatprep.subr.mxu0 0.0
        %603 = vmatpush1.msra.mxu0 0.0
        %604 = vmatprep.subr.mxu0 0.0
        %605 = vmatpush1.msra.mxu0 0.0
        %606 = vmatprep.subr.mxu0 0.0
        %607 = vmatpush1.msra.mxu0 0.0
        %608 = vmatprep.subr.mxu0 0.0
        %609 = vmatpush1.msra.mxu0 0.0
        %610 = vmatprep.subr.mxu0 0.0
        %611 = vmatpush1.msra.mxu0 0.0
        %612 = vmatprep.subr.mxu0 0.0
        %613 = vmatpush1.msra.mxu0 0.0
        %614 = vmatprep.subr.mxu0 0.0
        %615 = vmatpush1.msra.mxu0 0.0
        %616 = vmatprep.subr.mxu0 0.0
        %617 = vmatpush1.msra.mxu0 0.0
        %618 = vmatprep.subr.mxu0 0.0
        %619 = vmatpush1.msra.mxu0 0.0
        %620 = vmatprep.subr.mxu0 0.0
        %621 = vmatpush1.msra.mxu0 0.0
        %622 = vmatprep.subr.mxu0 0.0
        %623 = vmatpush1.msra.mxu0 0.0
        %624 = vmatprep.subr.mxu0 0.0
        %625 = vmatpush1.msra.mxu0 0.0
        %626 = vmatprep.subr.mxu0 0.0
        %627 = vmatpush1.msra.mxu0 0.0
        %628 = vmatprep.subr.mxu0 0.0
        %629 = vmatpush1.msra.mxu0 0.0
        %630 = vmatprep.subr.mxu0 0.0
        %631 = vmatpush1.msra.mxu0 0.0
        %632 = vmatprep.subr.mxu0 0.0
        %633 = vmatpush1.msra.mxu0 0.0
        %634 = vmatprep.subr.mxu0 0.0
        %635 = vmatpush1.msra.mxu0 0.0
        %636 = vmatprep.subr.mxu0 0.0
        %637 = vmatpush1.msra.mxu0 0.0
        %638 = vmatprep.subr.mxu0 0.0
        %639 = vmatpush1.msra.mxu0 0.0
        %640 = vmatprep.subr.mxu0 0.0
        %641 = vmatpush1.msra.mxu0 0.0
        %642 = vmatprep.subr.mxu0 0.0
        %643 = vmatpush1.msra.mxu0 0.0
        %644 = vmatprep.subr.mxu0 0.0
        %645 = vmatpush1.msra.mxu0 0.0
        %646 = vmatprep.subr.mxu0 0.0
        %647 = vmatpush1.msra.mxu0 0.0
        %648 = vmatprep.mubr.f32.mxu0 0.0
        %649 = vmatmul.mubr.f32.gmra.mrb[0].mxu0 %v573
        %v650 = vpop.f32.mrb[0].mxu0
        %v651 = vadd.f32 %v554, %v650
        %v652 = vpop.f32.mrb[0].mxu0
        %v653 = vadd.f32 %v554, %v652
        %654 = vmatprep.mubr.f32.mxu0 0.0
        %655 = vmatmul.mubr.f32.gmra.mrb[0].mxu0 %v576
        %v656 = vpop.f32.mrb[0].mxu0
        %v657 = vadd.f32 %v559, %v656
        %v658 = vpop.f32.mrb[0].mxu0
        %v659 = vadd.f32 %v559, %v658
        %660 = vmatprep.mubr.f32.mxu0 0.0
        %661 = vmatmul.mubr.f32.gmra.mrb[0].mxu0 %v579
        %v662 = vpop.f32.mrb[0].mxu0
        %v663 = vadd.f32 %v564, %v662
        %v664 = vpop.f32.mrb[0].mxu0
        %v665 = vadd.f32 %v564, %v664
        %666 = vmatprep.mubr.f32.mxu0 0.0
        %667 = vmatmul.mubr.f32.gmra.mrb[0].mxu0 %v582
        %v668 = vpop.f32.mrb[0].mxu0
        %v669 = vadd.f32 %v569, %v668
        %v670 = vpop.f32.mrb[0].mxu0
        %v671 = vadd.f32 %v569, %v670
        %672 = vdwg.mxu0
        %673 = vmatprep.subr.mxu0 0.0
        %674 = vmatpush1.msra.mxu0 %v533
        %675 = vmatprep.subr.mxu0 0.0
        %676 = vmatpush1.msra.mxu0 %v536
        %677 = vmatprep.subr.mxu0 0.0
        %678 = vmatpush1.msra.mxu0 %v539
        %679 = vmatprep.subr.mxu0 0.0
        %680 = vmatpush1.msra.mxu0 %v542
        %681 = vmatprep.subr.mxu0 0.0
        %682 = vmatpush1.msra.mxu0 0.0
        %683 = vmatprep.subr.mxu0 0.0
        %684 = vmatpush1.msra.mxu0 0.0
        %685 = vmatprep.subr.mxu0 0.0
        %686 = vmatpush1.msra.mxu0 0.0
        %687 = vmatprep.subr.mxu0 0.0
        %688 = vmatpush1.msra.mxu0 0.0
        %689 = vmatprep.subr.mxu0 0.0
        %690 = vmatpush1.msra.mxu0 0.0
        %691 = vmatprep.subr.mxu0 0.0
        %692 = vmatpush1.msra.mxu0 0.0
        %693 = vmatprep.subr.mxu0 0.0
        %694 = vmatpush1.msra.mxu0 0.0
        %695 = vmatprep.subr.mxu0 0.0
        %696 = vmatpush1.msra.mxu0 0.0
        %697 = vmatprep.subr.mxu0 0.0
        %698 = vmatpush1.msra.mxu0 0.0
        %699 = vmatprep.subr.mxu0 0.0
        %700 = vmatpush1.msra.mxu0 0.0
        %701 = vmatprep.subr.mxu0 0.0
        %702 = vmatpush1.msra.mxu0 0.0
        %703 = vmatprep.subr.mxu0 0.0
        %704 = vmatpush1.msra.mxu0 0.0
        %705 = vmatprep.subr.mxu0 0.0
        %706 = vmatpush1.msra.mxu0 0.0
        %707 = vmatprep.subr.mxu0 0.0
        %708 = vmatpush1.msra.mxu0 0.0
        %709 = vmatprep.subr.mxu0 0.0
        %710 = vmatpush1.msra.mxu0 0.0
        %711 = vmatprep.subr.mxu0 0.0
        %712 = vmatpush1.msra.mxu0 0.0
        %713 = vmatprep.subr.mxu0 0.0
        %714 = vmatpush1.msra.mxu0 0.0
        %715 = vmatprep.subr.mxu0 0.0
        %716 = vmatpush1.msra.mxu0 0.0
        %717 = vmatprep.subr.mxu0 0.0
        %718 = vmatpush1.msra.mxu0 0.0
        %719 = vmatprep.subr.mxu0 0.0
        %720 = vmatpush1.msra.mxu0 0.0
        %721 = vmatprep.subr.mxu0 0.0
        %722 = vmatpush1.msra.mxu0 0.0
        %723 = vmatprep.subr.mxu0 0.0
        %724 = vmatpush1.msra.mxu0 0.0
        %725 = vmatprep.subr.mxu0 0.0
        %726 = vmatpush1.msra.mxu0 0.0
        %727 = vmatprep.subr.mxu0 0.0
        %728 = vmatpush1.msra.mxu0 0.0
        %729 = vmatprep.subr.mxu0 0.0
        %730 = vmatpush1.msra.mxu0 0.0
        %731 = vmatprep.subr.mxu0 0.0
        %732 = vmatpush1.msra.mxu0 0.0
        %733 = vmatprep.subr.mxu0 0.0
        %734 = vmatpush1.msra.mxu0 0.0
        %735 = vmatprep.subr.mxu0 0.0
        %736 = vmatpush1.msra.mxu0 0.0
        %737 = vmatprep.mubr.f32.mxu0 0.0
        %738 = vmatmul.mubr.f32.gmra.mrb[0].mxu0 %v573
        %v739 = vpop.f32.mrb[0].mxu0
        %v740 = vadd.f32 %v554, %v739
        %v741 = vpop.f32.mrb[0].mxu0
        %742 = vmatprep.mubr.f32.mxu0 0.0
        %743 = vmatmul.mubr.f32.gmra.mrb[0].mxu0 %v576
        %v744 = vpop.f32.mrb[0].mxu0
        %v745 = vadd.f32 %v559, %v744
        %v746 = vpop.f32.mrb[0].mxu0
        %747 = vmatprep.mubr.f32.mxu0 0.0
        %748 = vmatmul.mubr.f32.gmra.mrb[0].mxu0 %v579
        %v749 = vpop.f32.mrb[0].mxu0
        %v750 = vadd.f32 %v564, %v749
        %v751 = vpop.f32.mrb[0].mxu0
        %752 = vmatprep.mubr.f32.mxu0 0.0
        %753 = vmatmul.mubr.f32.gmra.mrb[0].mxu0 %v582
        %v754 = vpop.f32.mrb[0].mxu0
        %v755 = vadd.f32 %v569, %v754
        %v756 = vpop.f32.mrb[0].mxu0
        %757 = vdwg.mxu0
        %v758 = vmax.f32 %v651, 0.0
        %v759 = vmax.f32 %v653, 0.0
        %v760 = vmax.f32 %v740, 0.0
        %v761 = vmax.f32 %v657, 0.0
        %v762 = vmax.f32 %v659, 0.0
        %v763 = vmax.f32 %v745, 0.0
        %v764 = vmax.f32 %v663, 0.0
        %v765 = vmax.f32 %v665, 0.0
        %v766 = vmax.f32 %v750, 0.0
        %v767 = vmax.f32 %v669, 0.0
        %v768 = vmax.f32 %v671, 0.0
        %v769 = vmax.f32 %v755, 0.0
        %v770 = vld [vmem:[%s5] sm:$0x3]
        %v771 = vld [vmem:[%s6] sm:$0x3]
        %773 = vset.pattern.permute.xlu0 0
        %774 = vperm.xlu0 %773, %v771
        %v775 = vpop.permute.xlu0 %774
        %v778 = vsel %vm571, %v770, 0
        %780 = vmatprep.subr.mxu0 %v759
        %781 = vmatpush1.msra.mxu0 %v758
        %782 = vmatprep.subr.mxu0 %v762
        %783 = vmatpush1.msra.mxu0 %v761
        %784 = vmatprep.subr.mxu0 %v765
        %785 = vmatpush1.msra.mxu0 %v764
        %786 = vmatprep.subr.mxu0 %v768
        %787 = vmatpush1.msra.mxu0 %v767
        %788 = vmatprep.subr.mxu0 0.0
        %789 = vmatpush1.msra.mxu0 0.0
        %790 = vmatprep.subr.mxu0 0.0
        %791 = vmatpush1.msra.mxu0 0.0
        %792 = vmatprep.subr.mxu0 0.0
        %793 = vmatpush1.msra.mxu0 0.0
        %794 = vmatprep.subr.mxu0 0.0
        %795 = vmatpush1.msra.mxu0 0.0
        %796 = vmatprep.subr.mxu0 0.0
        %797 = vmatpush1.msra.mxu0 0.0
        %798 = vmatprep.subr.mxu0 0.0
        %799 = vmatpush1.msra.mxu0 0.0
        %800 = vmatprep.subr.mxu0 0.0
        %801 = vmatpush1.msra.mxu0 0.0
        %802 = vmatprep.subr.mxu0 0.0
        %803 = vmatpush1.msra.mxu0 0.0
        %804 = vmatprep.subr.mxu0 0.0
        %805 = vmatpush1.msra.mxu0 0.0
        %806 = vmatprep.subr.mxu0 0.0
        %807 = vmatpush1.msra.mxu0 0.0
        %808 = vmatprep.subr.mxu0 0.0
        %809 = vmatpush1.msra.mxu0 0.0
        %810 = vmatprep.subr.mxu0 0.0
        %811 = vmatpush1.msra.mxu0 0.0
        %812 = vmatprep.subr.mxu0 0.0
        %813 = vmatpush1.msra.mxu0 0.0
        %814 = vmatprep.subr.mxu0 0.0
        %815 = vmatpush1.msra.mxu0 0.0
        %816 = vmatprep.subr.mxu0 0.0
        %817 = vmatpush1.msra.mxu0 0.0
        %818 = vmatprep.subr.mxu0 0.0
        %819 = vmatpush1.msra.mxu0 0.0
        %820 = vmatprep.subr.mxu0 0.0
        %821 = vmatpush1.msra.mxu0 0.0
        %822 = vmatprep.subr.mxu0 0.0
        %823 = vmatpush1.msra.mxu0 0.0
        %824 = vmatprep.subr.mxu0 0.0
        %825 = vmatpush1.msra.mxu0 0.0
        %826 = vmatprep.subr.mxu0 0.0
        %827 = vmatpush1.msra.mxu0 0.0
        %828 = vmatprep.subr.mxu0 0.0
        %829 = vmatpush1.msra.mxu0 0.0
        %830 = vmatprep.subr.mxu0 0.0
        %831 = vmatpush1.msra.mxu0 0.0
        %832 = vmatprep.subr.mxu0 0.0
        %833 = vmatpush1.msra.mxu0 0.0
        %834 = vmatprep.subr.mxu0 0.0
        %835 = vmatpush1.msra.mxu0 0.0
        %836 = vmatprep.subr.mxu0 0.0
        %837 = vmatpush1.msra.mxu0 0.0
        %838 = vmatprep.subr.mxu0 0.0
        %839 = vmatpush1.msra.mxu0 0.0
        %840 = vmatprep.subr.mxu0 0.0
        %841 = vmatpush1.msra.mxu0 0.0
        %842 = vmatprep.subr.mxu0 0.0
        %843 = vmatpush1.msra.mxu0 0.0
        %844 = vmatprep.mubr.f32.mxu0 0.0
        %845 = vmatmul.mubr.f32.gmra.mrb[0].mxu0 %v778
        %v846 = vpop.f32.mrb[0].mxu0
        %v847 = vadd.f32 %v775, %v846
        %v848 = vpop.f32.mrb[0].mxu0
        %v849 = vadd.f32 %v775, %v848
        %850 = vdwg.mxu0
        %851 = vmatprep.subr.mxu0 0.0
        %852 = vmatpush1.msra.mxu0 %v760
        %853 = vmatprep.subr.mxu0 0.0
        %854 = vmatpush1.msra.mxu0 %v763
        %855 = vmatprep.subr.mxu0 0.0
        %856 = vmatpush1.msra.mxu0 %v766
        %857 = vmatprep.subr.mxu0 0.0
        %858 = vmatpush1.msra.mxu0 %v769
        %859 = vmatprep.subr.mxu0 0.0
        %860 = vmatpush1.msra.mxu0 0.0
        %861 = vmatprep.subr.mxu0 0.0
        %862 = vmatpush1.msra.mxu0 0.0
        %863 = vmatprep.subr.mxu0 0.0
        %864 = vmatpush1.msra.mxu0 0.0
        %865 = vmatprep.subr.mxu0 0.0
        %866 = vmatpush1.msra.mxu0 0.0
        %867 = vmatprep.subr.mxu0 0.0
        %868 = vmatpush1.msra.mxu0 0.0
        %869 = vmatprep.subr.mxu0 0.0
        %870 = vmatpush1.msra.mxu0 0.0
        %871 = vmatprep.subr.mxu0 0.0
        %872 = vmatpush1.msra.mxu0 0.0
        %873 = vmatprep.subr.mxu0 0.0
        %874 = vmatpush1.msra.mxu0 0.0
        %875 = vmatprep.subr.mxu0 0.0
        %876 = vmatpush1.msra.mxu0 0.0
        %877 = vmatprep.subr.mxu0 0.0
        %878 = vmatpush1.msra.mxu0 0.0
        %879 = vmatprep.subr.mxu0 0.0
        %880 = vmatpush1.msra.mxu0 0.0
        %881 = vmatprep.subr.mxu0 0.0
        %882 = vmatpush1.msra.mxu0 0.0
        %883 = vmatprep.subr.mxu0 0.0
        %884 = vmatpush1.msra.mxu0 0.0
        %885 = vmatprep.subr.mxu0 0.0
        %886 = vmatpush1.msra.mxu0 0.0
        %887 = vmatprep.subr.mxu0 0.0
        %888 = vmatpush1.msra.mxu0 0.0
        %889 = vmatprep.subr.mxu0 0.0
        %890 = vmatpush1.msra.mxu0 0.0
        %891 = vmatprep.subr.mxu0 0.0
        %892 = vmatpush1.msra.mxu0 0.0
        %893 = vmatprep.subr.mxu0 0.0
        %894 = vmatpush1.msra.mxu0 0.0
        %895 = vmatprep.subr.mxu0 0.0
        %896 = vmatpush1.msra.mxu0 0.0
        %897 = vmatprep.subr.mxu0 0.0
        %898 = vmatpush1.msra.mxu0 0.0
        %899 = vmatprep.subr.mxu0 0.0
        %900 = vmatpush1.msra.mxu0 0.0
        %901 = vmatprep.subr.mxu0 0.0
        %902 = vmatpush1.msra.mxu0 0.0
        %903 = vmatprep.subr.mxu0 0.0
        %904 = vmatpush1.msra.mxu0 0.0
        %905 = vmatprep.subr.mxu0 0.0
        %906 = vmatpush1.msra.mxu0 0.0
        %907 = vmatprep.subr.mxu0 0.0
        %908 = vmatpush1.msra.mxu0 0.0
        %909 = vmatprep.subr.mxu0 0.0
        %910 = vmatpush1.msra.mxu0 0.0
        %911 = vmatprep.subr.mxu0 0.0
        %912 = vmatpush1.msra.mxu0 0.0
        %913 = vmatprep.subr.mxu0 0.0
        %914 = vmatpush1.msra.mxu0 0.0
        %915 = vmatprep.mubr.f32.mxu0 0.0
        %916 = vmatmul.mubr.f32.gmra.mrb[0].mxu0 %v778
        %v917 = vpop.f32.mrb[0].mxu0
        %v918 = vadd.f32 %v775, %v917
        %v919 = vpop.f32.mrb[0].mxu0
        %920 = vdwg.mxu0
        %v924 = vcombine.low %v847, %v849
        %v926 = vunpack.c.l.s4 1983009808
        %v927 = vunpack.c.0.s8 %v926
        %v928 = vlaneseq
        %v929 = vshrl.u32 %v928, 7
        %v930 = vsub.s32 %v927, %v929
        %v931 = vrot.slane %v924, %v930
        %v933 = vunpack.c.l.s4 1983009808
        %v934 = vunpack.c.0.s8 %v933
        %v935 = vlaneseq
        %v936 = vshrl.u32 %v935, 7
        %v937 = vsub.s32 %v934, %v936
        %v938 = vrot.slane %v918, %v937
        %v939 = vcombine.low %v931, %v938
        %941 = vst [vmem:[%s284] sm:$0x3f] %v939
        %s942 = sand.u32 %s181, 1
        %s943 = scalar_lea.sflag [#allocation3], %s942
        %s944 = sand.u32 %s181, 1
        %s945 = smul.addr %s944, 6
        %s946 = scalar_lea.vmem [#allocation2], %s945
        // Predicated region
        $region49: #{tpu_custom_call.1} parent=47 // pred_check
          %p947 = pneg %p191
        $region50: #{tpu_custom_call.1} parent=47 // pred_check_branch
          %949 = sbr.rel (%p947) target = $region52
        $region51: #{tpu_custom_call.1} parent=47 // pred_region
          %s950 = smul.u32 3, %s21
          %s951 = ssub.s32 5, %s950
          %p952 = scmp.lt.s32.totalorder %s951, 3
          %s953 = scalar_select %p952, %s951, 3
          %s954 = smul.u32 32, %s953
          %s956 = ssub.s32 96, %s954
          %957 = vsyncadd %s943, %s956
          %p958 = scmp.ne.s32.totalorder 0, %s954
          %s959 = smul.addr %s950, 32
          %s960 = scalar_lea.hbm %s7, %s959
          %s961 = smul.u32 %s953, 2
          %s962 = sshll.u32 %s961, 4
          %s963 = sshll.u32 %s946, 4
          %s964 = int_to_ptr.vmem [resolvable:$true] %s963
          %966 = dma.vmem_to_hbm [thread:$0]  (%p958), %s964, %s962, %s960, %s943
        $region52: #{tpu_custom_call.1} parent=47 // pred_fallthru
          _
      $region48: #{tpu_custom_call.1} parent=5 // pred_fallthru
        _
      %p967 = scmp.le.s32.totalorder 2, %s16
      // Predicated region
      $region53: #{tpu_custom_call.1} parent=5 // pred_check
        %p968 = pneg %p967
      $region54: #{tpu_custom_call.1} parent=5 // pred_check_branch
        %970 = sbr.rel (%p968) target = $region56
      $region55: #{tpu_custom_call.1} parent=5 // pred_region
        %s971 = ssub.s32 %s16, 2
        // Predicated region
        $region57: #{tpu_custom_call.1} parent=55 // pred_check
          %p972 = pneg %p197
        $region58: #{tpu_custom_call.1} parent=55 // pred_check_branch
          %974 = sbr.rel (%p972) target = $region60
        $region59: #{tpu_custom_call.1} parent=55 // pred_region
          %s975 = sand.u32 %s182, 1
          %s976 = scalar_lea.sflag [#allocation3], %s975
          %s977 = sand.u32 %s182, 1
          %s978 = smul.addr %s977, 6
          %s979 = scalar_lea.vmem [#allocation2], %s978
          %980 = dma.done %s976, 96
        $region60: #{tpu_custom_call.1} parent=55 // pred_fallthru
          _
      $region56: #{tpu_custom_call.1} parent=5 // pred_fallthru
        _
    $region6: #{tpu_custom_call.1} parent=1 // loop_footer
      %s20 = sadd.s32 1, %s16
    $region7: #{tpu_custom_call.1} parent=1 // loop_footer_branch
      %15 = sbr.rel target = $region3
    $region8: #{tpu_custom_call.1} parent=1 // loop_exit
      _
    %981 = vsyncpa [#allocation3], 1
    %s982 = scalar_lea.sflag [#allocation3], 1
    %983 = vsyncpa %s982, 1

</llo_original>
